<compile_context>
chip_gen: v5e
topology: v5e:2x2
jax: 0.10.0
libtpu: 0.0.40
codegen_flags: <defaults>
</compile_context>

<pallas_src>
import functools

import jax
import jax.numpy as jnp
from jax.experimental import pallas as pl
from jax.experimental.pallas import tpu as pltpu

IGNORE_INDEX = -100

_MAX_TILE_HW = 32768          # pixels (lanes) per grid step (upper cap)


def _vmem_limits():
    """(input_block_budget_bytes, vmem_limit_bytes) derived from the chip."""
    try:
        cap = pltpu.get_tpu_info().vmem_capacity_bytes
    except Exception:  # pragma: no cover - conservative fallback (v7x-sized)
        cap = 64 * 1024 * 1024
    vmem_limit = min(cap * 3 // 4, 96 * 1024 * 1024)   # 96 MiB v5e/v6e, 48 MiB v7x
    input_budget = vmem_limit // 2                      # 48 MiB v5e/v6e, 24 MiB v7x
    return int(input_budget), int(vmem_limit)


def _choose_tile_hw(hw, num_classes, logits_itemsize, input_budget):
    """Largest 128-multiple lane tile that keeps double-buffered inputs in budget."""
    per_pixel_bytes = num_classes * logits_itemsize + 4    # logits + int32 label
    max_by_vmem = max(128, input_budget // (2 * per_pixel_bytes))  # x2 double buffer
    tile = min(_MAX_TILE_HW, int(max_by_vmem))
    tile = max(128, (tile // 128) * 128)
    if hw <= tile:
        return hw            # single full-extent block (always legal, no mask needed)
    return tile              # 128-multiple tile; ragged tail handled by in-kernel mask


def _joint_loss_kernel(logits_ref, labels_ref, stats_ref,
                       inter_acc, psum_acc, tsum_acc, ce_acc,
                       *, hw, tiles_per_split, ignore_index, needs_tail_mask):
    """Accumulate per-class Dice stats + scalar CE sum for one (image, split).

    stats columns: 0 = sum_p prob_c * onehot_c   (dice intersection)
                   1 = sum_p prob_c              (dice denominator, preds)
                   2 = sum_p onehot_c            (dice denominator, targets / valid count)
                   3 = (row 0 only) sum_p CE_p   (cross-entropy sum over pixels)
    """
    j = pl.program_id(2)
    last_j = pl.num_programs(2) - 1

    @pl.when(j == 0)
    def _init():
        inter_acc[...] = jnp.zeros_like(inter_acc)
        psum_acc[...] = jnp.zeros_like(psum_acc)
        tsum_acc[...] = jnp.zeros_like(tsum_acc)
        ce_acc[...] = jnp.zeros_like(ce_acc)

    x = logits_ref[0].astype(jnp.float32)          # (C, T): classes on sublanes, pixels on lanes
    labels = labels_ref[0]                         # (1, T) int32
    c, t = x.shape

    valid = labels != ignore_index                 # (1, T) bool
    if needs_tail_mask:
        # Only generated when H*W is not a multiple of the tile: sanitize the
        # Pallas-padded lanes of the (globally) last tile.
        s_idx = pl.program_id(1)
        lane = jax.lax.broadcasted_iota(jnp.int32, (1, t), 1)
        in_bounds = ((s_idx * tiles_per_split + j) * t + lane) < hw
        valid = jnp.logical_and(in_bounds, valid)
        x = jnp.where(in_bounds, x, 0.0)
    valid_f = valid.astype(jnp.float32)

    class_ids = jax.lax.broadcasted_iota(jnp.int32, (c, t), 0)
    one_hot = jnp.where(jnp.logical_and(class_ids == labels, valid), 1.0, 0.0)   # (C, T)

    # Numerically stable softmax / log-softmax over the class (sublane) axis.
    m = jnp.max(x, axis=0, keepdims=True)                              # (1, T)
    z = x - m                                                          # (C, T)
    e = jnp.exp(z)                                                     # (C, T)
    s = jnp.sum(e, axis=0, keepdims=True)                              # (1, T)
    inv = pl.reciprocal(s, approx=True) * valid_f                      # (1, T), 0 for invalid
    probs = e * inv                                                    # (C, T)
    # Per-pixel CE: log(sum exp) - z[label]  (0 for ignored / padded pixels).
    ce = (jnp.log(s) - jnp.sum(one_hot * z, axis=0, keepdims=True)) * valid_f    # (1, T)

    inter_acc[...] += jnp.sum(probs * one_hot, axis=1, keepdims=True)  # (C, 1)
    psum_acc[...] += jnp.sum(probs, axis=1, keepdims=True)             # (C, 1)
    tsum_acc[...] += jnp.sum(one_hot, axis=1, keepdims=True)           # (C, 1)
    ce_acc[...] += jnp.sum(ce, axis=1, keepdims=True)                  # (1, 1)

    @pl.when(j == last_j)
    def _flush():
        ce_col = jnp.broadcast_to(ce_acc[...], (c, 1))                 # epilogue reads row 0 only
        stats_ref[0, 0] = jnp.concatenate(
            [inter_acc[...], psum_acc[...], tsum_acc[...], ce_col], axis=1)


@functools.partial(jax.jit, static_argnames=("first_weight", "second_weight"))
def joint_loss(logits_nchw, targets, first_weight=1.0, second_weight=0.5):
    """JointLoss.forward(logits, targets) -> scalar loss."""
    n, c, h, w = logits_nchw.shape
    hw = h * w

    # Free, layout-preserving reshapes (no transpose / pad copies, native dtype).
    logits = logits_nchw.reshape(n, c, hw)
    labels = targets.reshape(n, 1, hw).astype(jnp.int32)

    input_budget, vmem_limit = _vmem_limits()
    tile_hw = _choose_tile_hw(hw, c, jnp.dtype(logits.dtype).itemsize, input_budget)
    num_hw_tiles = pl.cdiv(hw, tile_hw)
    needs_tail_mask = (hw % tile_hw) != 0

    # Split the pixel reduction into two parallel chunks when possible so both
    # v7x TensorCores are busy even for N == 1 (harmless on single-TC chips).
    n_split = 2 if (num_hw_tiles % 2 == 0 and num_hw_tiles >= 2) else 1
    tiles_per_split = num_hw_tiles // n_split

    kernel = functools.partial(
        _joint_loss_kernel,
        hw=hw,
        tiles_per_split=tiles_per_split,
        ignore_index=IGNORE_INDEX,
        needs_tail_mask=needs_tail_mask,
    )

    cost = pl.CostEstimate(
        flops=int(n * hw * (10 * c + 10)),
        transcendentals=int(n * hw * (c + 2)),
        bytes_accessed=int(logits.size * jnp.dtype(logits.dtype).itemsize
                           + labels.size * 4 + n * n_split * c * 4 * 4),
    )

    stats = pl.pallas_call(
        kernel,
        out_shape=jax.ShapeDtypeStruct((n, n_split, c, 4), jnp.float32),
        grid_spec=pltpu.PrefetchScalarGridSpec(
            num_scalar_prefetch=0,
            grid=(n, n_split, tiles_per_split),
            in_specs=[
                pl.BlockSpec((1, c, tile_hw),
                             lambda i, s, j: (i, 0, s * tiles_per_split + j)),
                pl.BlockSpec((1, 1, tile_hw),
                             lambda i, s, j: (i, 0, s * tiles_per_split + j)),
            ],
            out_specs=pl.BlockSpec((1, 1, c, 4), lambda i, s, j: (i, s, 0, 0)),
            scratch_shapes=[
                pltpu.VMEM((c, 1), jnp.float32),   # dice intersection
                pltpu.VMEM((c, 1), jnp.float32),   # sum of probs
                pltpu.VMEM((c, 1), jnp.float32),   # sum of one-hot (valid count per class)
                pltpu.VMEM((1, 1), jnp.float32),   # CE sum (scalar)
            ],
        ),
        compiler_params=pltpu.CompilerParams(
            dimension_semantics=("parallel", "parallel", "arbitrary"),
            vmem_limit_bytes=vmem_limit),
        cost_estimate=cost,
    )(logits, labels)

    per_class = jnp.sum(stats, axis=(0, 1))                           # (C, 4)
    inter, psum, tsum = per_class[:, 0], per_class[:, 1], per_class[:, 2]
    ce_sum = jnp.sum(stats[:, :, 0, 3])                               # CE total (row 0 only)

    eps = 1e-6
    # n_valid counted via sum(tsum): identical to the per-pixel valid count for
    # well-formed targets (labels in [0, C) or ignore_index).
    n_valid = jnp.maximum(jnp.sum(tsum), 1.0)
    ce_mean = ce_sum / n_valid                                        # first loss (CE, mean)
    dice = 1.0 - jnp.mean((2.0 * inter + eps) / (psum + tsum + eps))  # second loss (soft Dice)

    # TODO(synk): optional bf16 numerator math for C>=16 on v6e/v7x (no benefit at small C).
    return first_weight * ce_mean + second_weight * dice


def joint_loss_ref(logits_nchw, targets, first_weight=1.0, second_weight=0.5):
    """Plain-JAX reference (mirrors the PyTorch CE + Dice JointLoss)."""
    n, c, h, w = logits_nchw.shape
    lg = jnp.transpose(logits_nchw, (0, 2, 3, 1)).reshape(-1, c).astype(jnp.float32)
    lb = targets.reshape(-1)
    valid = (lb != IGNORE_INDEX).astype(jnp.float32)
    logp = jax.nn.log_softmax(lg, axis=-1)
    oh = jax.nn.one_hot(jnp.where(lb == IGNORE_INDEX, 0, lb), c) * valid[:, None]
    ce = -(oh * logp).sum(-1)
    ce_mean = ce.sum() / jnp.maximum(valid.sum(), 1.0)
    probs = jax.nn.softmax(lg, axis=-1) * valid[:, None]
    inter = (probs * oh).sum(0)
    psum = probs.sum(0)
    tsum = oh.sum(0)
    eps = 1e-6
    dice = 1.0 - jnp.mean((2.0 * inter + eps) / (psum + tsum + eps))
    return first_weight * ce_mean + second_weight * dice


if __name__ == "__main__":
    key = jax.random.PRNGKey(0)
    k1, k2 = jax.random.split(key)

    N, C, H, W = 2, 4, 16, 16
    logits = jax.random.normal(k1, (N, C, H, W), jnp.float32)
    targets = jax.random.randint(k2, (N, H, W), 0, C, jnp.int32)
    # Exercise ignore_index on a few pixels.
    targets = targets.at[0, 0, :3].set(IGNORE_INDEX)

    out = joint_loss(logits, targets, first_weight=1.0, second_weight=0.5)
    out = jax.block_until_ready(out)

    ref = joint_loss_ref(logits, targets, first_weight=1.0, second_weight=0.5)
    # Tolerance loosened from 1e-5: pl.reciprocal(approx=True) has ~2^-12 rel. error.
    assert jnp.allclose(out, ref, atol=5e-4, rtol=5e-4), (out, ref)

    print("KERNEL_OK")
</pallas_src>

<mosaic_0001>
module attributes {stable_mosaic.version = 11 : i64} {
  func.func @_joint_loss_kernel(%arg0: i32, %arg1: i32, %arg2: i32, %arg3: memref<1x4x256xf32, #tpu.memory_space<vmem>>, %arg4: memref<1x1x256xi32, #tpu.memory_space<vmem>>, %arg5: memref<1x1x4x4xf32, #tpu.memory_space<vmem>>, %arg6: memref<4x1xf32, #tpu.memory_space<vmem>>, %arg7: memref<4x1xf32, #tpu.memory_space<vmem>>, %arg8: memref<4x1xf32, #tpu.memory_space<vmem>>, %arg9: memref<1x1xf32, #tpu.memory_space<vmem>>) attributes {dimension_semantics = [#tpu.dimension_semantics<parallel>, #tpu.dimension_semantics<parallel>, #tpu.dimension_semantics<arbitrary>], iteration_bounds = array<i64: 2, 1, 1>, scalar_prefetch = 0 : i64, scratch_operands = 4 : i64, tpu.core_type = #tpu.core_type<tc>, window_params = [{transform_indices = @transform_0, window_bounds = array<i64: 1, 4, 256>}, {transform_indices = @transform_1, window_bounds = array<i64: 1, 1, 256>}, {transform_indices = @transform_2, window_bounds = array<i64: 1, 1, 4, 4>}]} {
    %c0_i32 = arith.constant 0 : i32
    %0 = arith.cmpi eq, %arg2, %c0_i32 : i32
    %1 = arith.extui %0 : i1 to i32
    %c0_i32_0 = arith.constant 0 : i32
    %2 = arith.cmpi ne, %1, %c0_i32_0 : i32
    scf.if %2 {
      %cst_32 = arith.constant 0.000000e+00 : f32
      %60 = vector.broadcast %cst_32 : f32 to vector<4x1xf32>
      %c0_33 = arith.constant 0 : index
      %c0_34 = arith.constant 0 : index
      %61 = vector.load %arg6[%c0_33, %c0_34] : memref<4x1xf32, #tpu.memory_space<vmem>>, vector<4x1xf32>
      tpu.vector_store %arg6[%c0_33, %c0_34], %60 {strides = array<i32>} : memref<4x1xf32, #tpu.memory_space<vmem>>, vector<4x1xf32>,
      %cst_35 = arith.constant 0.000000e+00 : f32
      %62 = vector.broadcast %cst_35 : f32 to vector<4x1xf32>
      %c0_36 = arith.constant 0 : index
      %c0_37 = arith.constant 0 : index
      %63 = vector.load %arg7[%c0_36, %c0_37] : memref<4x1xf32, #tpu.memory_space<vmem>>, vector<4x1xf32>
      tpu.vector_store %arg7[%c0_36, %c0_37], %62 {strides = array<i32>} : memref<4x1xf32, #tpu.memory_space<vmem>>, vector<4x1xf32>,
      %cst_38 = arith.constant 0.000000e+00 : f32
      %64 = vector.broadcast %cst_38 : f32 to vector<4x1xf32>
      %c0_39 = arith.constant 0 : index
      %c0_40 = arith.constant 0 : index
      %65 = vector.load %arg8[%c0_39, %c0_40] : memref<4x1xf32, #tpu.memory_space<vmem>>, vector<4x1xf32>
      tpu.vector_store %arg8[%c0_39, %c0_40], %64 {strides = array<i32>} : memref<4x1xf32, #tpu.memory_space<vmem>>, vector<4x1xf32>,
      %cst_41 = arith.constant 0.000000e+00 : f32
      %66 = vector.broadcast %cst_41 : f32 to vector<1x1xf32>
      %c0_42 = arith.constant 0 : index
      %c0_43 = arith.constant 0 : index
      %67 = vector.load %arg9[%c0_42, %c0_43] : memref<1x1xf32, #tpu.memory_space<vmem>>, vector<1x1xf32>
      tpu.vector_store %arg9[%c0_42, %c0_43], %66 {strides = array<i32>} : memref<1x1xf32, #tpu.memory_space<vmem>>, vector<1x1xf32>,
    } else {
    }
    %c0 = arith.constant 0 : index
    %c0_1 = arith.constant 0 : index
    %c0_2 = arith.constant 0 : index
    %3 = vector.load %arg3[%c0, %c0_1, %c0_2] : memref<1x4x256xf32, #tpu.memory_space<vmem>>, vector<1x4x256xf32>
    %4 = vector.shape_cast %3 : vector<1x4x256xf32> to vector<4x256xf32>
    %c0_3 = arith.constant 0 : index
    %c0_4 = arith.constant 0 : index
    %c0_5 = arith.constant 0 : index
    %5 = vector.load %arg4[%c0_3, %c0_4, %c0_5] : memref<1x1x256xi32, #tpu.memory_space<vmem>>, vector<1x1x256xi32>
    %6 = vector.shape_cast %5 : vector<1x1x256xi32> to vector<1x256xi32>
    %c-100_i32 = arith.constant -100 : i32
    %7 = vector.broadcast %c-100_i32 : i32 to vector<1x256xi32>
    %8 = arith.cmpi ne, %6, %7 : vector<1x256xi32>
    %9 = arith.extui %8 : vector<1x256xi1> to vector<1x256xi32>
    %10 = arith.sitofp %9 : vector<1x256xi32> to vector<1x256xf32>
    %11 = tpu.iota {dimensions = array<i32: 0>} : vector<4x256xi32>
    %12 = vector.broadcast %6 : vector<1x256xi32> to vector<4x256xi32>
    %13 = arith.cmpi eq, %11, %12 : vector<4x256xi32>
    %14 = vector.broadcast %8 : vector<1x256xi1> to vector<4x256xi1>
    %15 = arith.andi %13, %14 : vector<4x256xi1>
    %cst = arith.constant 1.000000e+00 : f32
    %cst_6 = arith.constant 0.000000e+00 : f32
    %16 = vector.broadcast %cst : f32 to vector<4x256xf32>
    %17 = vector.broadcast %cst_6 : f32 to vector<4x256xf32>
    %18 = arith.select %15, %16, %17 : vector<4x256xi1>, vector<4x256xf32>
    %cst_7 = arith.constant dense<0xFF800000> : vector<256xf32>
    %19 = vector.multi_reduction <maximumf>, %4, %cst_7 [0] : vector<4x256xf32> to vector<256xf32>
    %20 = vector.shape_cast %19 : vector<256xf32> to vector<1x256xf32>
    %21 = vector.broadcast %20 : vector<1x256xf32> to vector<4x256xf32>
    %22 = arith.subf %4, %21 : vector<4x256xf32>
    %23 = math.exp %22 : vector<4x256xf32>
    %cst_8 = arith.constant dense<0.000000e+00> : vector<256xf32>
    %24 = vector.multi_reduction <add>, %23, %cst_8 [0] : vector<4x256xf32> to vector<256xf32>
    %25 = vector.shape_cast %24 : vector<256xf32> to vector<1x256xf32>
    %26 = tpu.reciprocal %25 {approx = true} : vector<1x256xf32> -> vector<1x256xf32>
    %27 = arith.mulf %26, %10 : vector<1x256xf32>
    %28 = vector.broadcast %27 : vector<1x256xf32> to vector<4x256xf32>
    %29 = arith.mulf %23, %28 : vector<4x256xf32>
    %30 = math.log %25 : vector<1x256xf32>
    %31 = arith.mulf %18, %22 : vector<4x256xf32>
    %cst_9 = arith.constant dense<0.000000e+00> : vector<256xf32>
    %32 = vector.multi_reduction <add>, %31, %cst_9 [0] : vector<4x256xf32> to vector<256xf32>
    %33 = vector.shape_cast %32 : vector<256xf32> to vector<1x256xf32>
    %34 = arith.subf %30, %33 : vector<1x256xf32>
    %35 = arith.mulf %34, %10 : vector<1x256xf32>
    %c0_10 = arith.constant 0 : index
    %c0_11 = arith.constant 0 : index
    %36 = vector.load %arg6[%c0_10, %c0_11] : memref<4x1xf32, #tpu.memory_space<vmem>>, vector<4x1xf32>
    %37 = arith.mulf %29, %18 : vector<4x256xf32>
    %cst_12 = arith.constant dense<0.000000e+00> : vector<4xf32>
    %38 = vector.multi_reduction <add>, %37, %cst_12 [1] : vector<4x256xf32> to vector<4xf32>
    %39 = vector.shape_cast %38 : vector<4xf32> to vector<4x1xf32>
    %40 = arith.addf %36, %39 : vector<4x1xf32>
    %c0_13 = arith.constant 0 : index
    %c0_14 = arith.constant 0 : index
    %41 = vector.load %arg6[%c0_13, %c0_14] : memref<4x1xf32, #tpu.memory_space<vmem>>, vector<4x1xf32>
    tpu.vector_store %arg6[%c0_13, %c0_14], %40 {strides = array<i32>} : memref<4x1xf32, #tpu.memory_space<vmem>>, vector<4x1xf32>,
    %c0_15 = arith.constant 0 : index
    %c0_16 = arith.constant 0 : index
    %42 = vector.load %arg7[%c0_15, %c0_16] : memref<4x1xf32, #tpu.memory_space<vmem>>, vector<4x1xf32>
    %cst_17 = arith.constant dense<0.000000e+00> : vector<4xf32>
    %43 = vector.multi_reduction <add>, %29, %cst_17 [1] : vector<4x256xf32> to vector<4xf32>
    %44 = vector.shape_cast %43 : vector<4xf32> to vector<4x1xf32>
    %45 = arith.addf %42, %44 : vector<4x1xf32>
    %c0_18 = arith.constant 0 : index
    %c0_19 = arith.constant 0 : index
    %46 = vector.load %arg7[%c0_18, %c0_19] : memref<4x1xf32, #tpu.memory_space<vmem>>, vector<4x1xf32>
    tpu.vector_store %arg7[%c0_18, %c0_19], %45 {strides = array<i32>} : memref<4x1xf32, #tpu.memory_space<vmem>>, vector<4x1xf32>,
    %c0_20 = arith.constant 0 : index
    %c0_21 = arith.constant 0 : index
    %47 = vector.load %arg8[%c0_20, %c0_21] : memref<4x1xf32, #tpu.memory_space<vmem>>, vector<4x1xf32>
    %cst_22 = arith.constant dense<0.000000e+00> : vector<4xf32>
    %48 = vector.multi_reduction <add>, %18, %cst_22 [1] : vector<4x256xf32> to vector<4xf32>
    %49 = vector.shape_cast %48 : vector<4xf32> to vector<4x1xf32>
    %50 = arith.addf %47, %49 : vector<4x1xf32>
    %c0_23 = arith.constant 0 : index
    %c0_24 = arith.constant 0 : index
    %51 = vector.load %arg8[%c0_23, %c0_24] : memref<4x1xf32, #tpu.memory_space<vmem>>, vector<4x1xf32>
    tpu.vector_store %arg8[%c0_23, %c0_24], %50 {strides = array<i32>} : memref<4x1xf32, #tpu.memory_space<vmem>>, vector<4x1xf32>,
    %c0_25 = arith.constant 0 : index
    %c0_26 = arith.constant 0 : index
    %52 = vector.load %arg9[%c0_25, %c0_26] : memref<1x1xf32, #tpu.memory_space<vmem>>, vector<1x1xf32>
    %cst_27 = arith.constant dense<0.000000e+00> : vector<1xf32>
    %53 = vector.multi_reduction <add>, %35, %cst_27 [1] : vector<1x256xf32> to vector<1xf32>
    %54 = vector.shape_cast %53 : vector<1xf32> to vector<1x1xf32>
    %55 = arith.addf %52, %54 : vector<1x1xf32>
    %c0_28 = arith.constant 0 : index
    %c0_29 = arith.constant 0 : index
    %56 = vector.load %arg9[%c0_28, %c0_29] : memref<1x1xf32, #tpu.memory_space<vmem>>, vector<1x1xf32>
    tpu.vector_store %arg9[%c0_28, %c0_29], %55 {strides = array<i32>} : memref<1x1xf32, #tpu.memory_space<vmem>>, vector<1x1xf32>,
    %c0_i32_30 = arith.constant 0 : i32
    %57 = arith.cmpi eq, %arg2, %c0_i32_30 : i32
    %58 = arith.extui %57 : i1 to i32
    %c0_i32_31 = arith.constant 0 : i32
    %59 = arith.cmpi ne, %58, %c0_i32_31 : i32
    scf.if %59 {
      %c0_32 = arith.constant 0 : index
      %c0_33 = arith.constant 0 : index
      %60 = vector.load %arg9[%c0_32, %c0_33] : memref<1x1xf32, #tpu.memory_space<vmem>>, vector<1x1xf32>
      %61 = vector.shape_cast %60 : vector<1x1xf32> to vector<1x1xf32>
      %62 = vector.broadcast %61 : vector<1x1xf32> to vector<4x1xf32>
      %c0_34 = arith.constant 0 : index
      %c0_35 = arith.constant 0 : index
      %63 = vector.load %arg6[%c0_34, %c0_35] : memref<4x1xf32, #tpu.memory_space<vmem>>, vector<4x1xf32>
      %c0_36 = arith.constant 0 : index
      %c0_37 = arith.constant 0 : index
      %64 = vector.load %arg7[%c0_36, %c0_37] : memref<4x1xf32, #tpu.memory_space<vmem>>, vector<4x1xf32>
      %c0_38 = arith.constant 0 : index
      %c0_39 = arith.constant 0 : index
      %65 = vector.load %arg8[%c0_38, %c0_39] : memref<4x1xf32, #tpu.memory_space<vmem>>, vector<4x1xf32>
      %66 = tpu.concatenate %63, %64, %65, %62 in 1 : vector<4x1xf32>, vector<4x1xf32>, vector<4x1xf32>, vector<4x1xf32> -> vector<4x4xf32>
      %c0_40 = arith.constant 0 : index
      %c0_41 = arith.constant 0 : index
      %c0_42 = arith.constant 0 : index
      %c0_43 = arith.constant 0 : index
      %67 = vector.load %arg5[%c0_40, %c0_41, %c0_42, %c0_43] : memref<1x1x4x4xf32, #tpu.memory_space<vmem>>, vector<1x1x4x4xf32>
      %68 = vector.shape_cast %67 : vector<1x1x4x4xf32> to vector<4x4xf32>
      %69 = vector.shape_cast %66 : vector<4x4xf32> to vector<1x1x4x4xf32>
      tpu.vector_store %arg5[%c0_40, %c0_41, %c0_42, %c0_43], %69 {strides = array<i32>} : memref<1x1x4x4xf32, #tpu.memory_space<vmem>>, vector<1x1x4x4xf32>,
    } else {
    }
    return
  }
  func.func @transform_0(%arg0: i32, %arg1: i32, %arg2: i32) -> (i32, i32, i32) {
    %c1_i32 = arith.constant 1 : i32
    %0 = arith.muli %arg1, %c1_i32 : i32
    %1 = arith.addi %0, %arg2 : i32
    %c0_i32 = arith.constant 0 : i32
    %c0_i32_0 = arith.constant 0 : i32
    return %arg0, %c0_i32, %1 : i32, i32, i32
  }
  func.func @transform_1(%arg0: i32, %arg1: i32, %arg2: i32) -> (i32, i32, i32) {
    %c1_i32 = arith.constant 1 : i32
    %0 = arith.muli %arg1, %c1_i32 : i32
    %1 = arith.addi %0, %arg2 : i32
    %c0_i32 = arith.constant 0 : i32
    %c0_i32_0 = arith.constant 0 : i32
    return %arg0, %c0_i32, %1 : i32, i32, i32
  }
  func.func @transform_2(%arg0: i32, %arg1: i32, %arg2: i32) -> (i32, i32, i32, i32) {
    %c0_i32 = arith.constant 0 : i32
    %c0_i32_0 = arith.constant 0 : i32
    %c0_i32_1 = arith.constant 0 : i32
    return %arg0, %arg1, %c0_i32, %c0_i32_0 : i32, i32, i32, i32
  }
}

</mosaic_0001>

<llo_original>
// kernel: joint_loss.1
$region0: #{joint_loss.1}
  #allocation0 [shape = 'u32[]', space=smem, size = 0x4, offset = 0x4, fixed_abs, tag = 'smem constant byte address 0x4 - core index']
  #allocation1 [shape = 'u32[72,128]{1,0:T(1,128)}', space=vmem, size = 0x9000, scoped, tag = 'internal scratch']
  #allocation2 [shape = 'f32[4,1]{1,0:T(4,128)}', space=vmem, size = 0x800, scoped, tag = 'scratch operand']
  #allocation3 [shape = 'f32[4,1]{1,0:T(4,128)}', space=vmem, size = 0x800, scoped, tag = 'scratch operand']
  #allocation4 [shape = 'f32[4,1]{1,0:T(4,128)}', space=vmem, size = 0x800, scoped, tag = 'scratch operand']
  #allocation5 [shape = 'f32[1,1]{1,0:T(1,128)}', space=vmem, size = 0x200, scoped, tag = 'scratch operand']
  %s0 = inlined_call_operand.vmem [shape: f32[2,4,256], index: 0, kind: input, shape index: {}]
  %s1 = inlined_call_operand.vmem [shape: s32[2,1,256], index: 1, kind: input, shape index: {}]
  %s2 = inlined_call_operand.vmem [shape: f32[2,1,4,4], index: 2, kind: output, shape index: {}]
  %s3 = sld [smem:[#allocation0]]
  $region49: #{joint_loss.1} parent=0
    _
  %s5 = ssub.s32 1, %s3
  %s6 = scalar_select 0, %s5, %s3
  loop: start=0, step=1, limit=4
  $region2: #{joint_loss.1} parent=0 // loop_pre_header
    _
  $region3: #{joint_loss.1} parent=0 // loop_header
    %s8 = sphi 0, %s12
    %p9 = scmp.ge.s32.totalorder %s8, 4
    %s15 = sphi 0, %s34
    %s16 = sphi 0, %s30
    %s17 = sphi 0, %s26
    %s18 = sphi 0, %s15
    %s19 = sphi 0, %s16
    %s20 = sphi 0, %s17
    %s21 = sphi 0, %s18
    %s22 = sphi 0, %s19
    %s23 = sphi 0, %s20
    %s41 = sphi 0, %s43
    %s44 = sphi 0, %s41
    %s45 = sphi 0, %s44
    %s61 = sphi 0, %s45
    %s71 = sphi 0, %s73
    %s74 = sphi 0, %s71
    %s75 = sphi 0, %s74
    %s91 = sphi 0, %s75
    %s99 = sphi 0, %s101
    %s102 = sphi 0, %s99
    %s103 = sphi 0, %s102
    %s119 = sphi 0, %s103
  $region4: #{joint_loss.1} parent=0 // loop_header_branch
    %11 = sbr.rel (%p9) target = $region8
  $region5: #{joint_loss.1} parent=0 // loop_body
    %s13 = ssub.s32 %s8, 1
    %s14 = ssub.s32 %s8, 2
    %s24 = sadd.s32 1, %s17
    %p25 = scmp.ge.s32.totalorder %s24, 1
    %s26 = scalar_select %p25, 0, %s24
    %s27 = sadd.s32 1, %s16
    %s28 = scalar_select %p25, %s27, %s16
    %p29 = scmp.ge.s32.totalorder %s28, 1
    %s30 = scalar_select %p29, 0, %s28
    %s31 = sadd.s32 1, %s15
    %s32 = scalar_select %p29, %s31, %s15
    %p33 = scmp.ge.s32.totalorder %s32, 2
    %s34 = scalar_select %p33, 0, %s32
    %s35 = sadd.s32 %s16, %s17
    %s36 = sadd.s32 %s30, %s26
    %s37 = ssub.s32 %s15, %s34
    %s38 = ssub.s32 %s35, %s36
    %s39 = sor.u32 %s37, %s38
    %p40 = scmp.eq.s32.totalorder %s39, 0
    %s42 = sadd.s32 %s41, 1
    %s43 = scalar_select %p40, %s41, %s42
    %p46 = pneg %p40
    %p47 = scmp.eq.s32.totalorder %s8, 1
    %p48 = por %p46, %p47
    %p49 = scmp.ne.s32.totalorder %s41, %s44
    %p50 = scmp.eq.s32.totalorder %s8, 0
    %p51 = por %p49, %p50
    %p52 = scmp.ne.s32.totalorder %s41, %s44
    %p53 = scmp.eq.s32.totalorder %s13, 1
    %p54 = por %p52, %p53
    %p55 = scmp.ne.s32.totalorder %s44, %s45
    %p56 = scmp.eq.s32.totalorder %s13, 0
    %p57 = por %p55, %p56
    %p58 = scmp.ne.s32.totalorder %s44, %s45
    %p59 = scmp.eq.s32.totalorder %s14, 1
    %p60 = por %p58, %p59
    %p62 = scmp.ne.s32.totalorder %s45, %s61
    %p63 = scmp.eq.s32.totalorder %s14, 0
    %p64 = por %p62, %p63
    %s65 = sadd.s32 %s16, %s17
    %s66 = sadd.s32 %s30, %s26
    %s67 = ssub.s32 %s15, %s34
    %s68 = ssub.s32 %s65, %s66
    %s69 = sor.u32 %s67, %s68
    %p70 = scmp.eq.s32.totalorder %s69, 0
    %s72 = sadd.s32 %s71, 1
    %s73 = scalar_select %p70, %s71, %s72
    %p76 = pneg %p70
    %p77 = scmp.eq.s32.totalorder %s8, 1
    %p78 = por %p76, %p77
    %p79 = scmp.ne.s32.totalorder %s71, %s74
    %p80 = scmp.eq.s32.totalorder %s8, 0
    %p81 = por %p79, %p80
    %p82 = scmp.ne.s32.totalorder %s71, %s74
    %p83 = scmp.eq.s32.totalorder %s13, 1
    %p84 = por %p82, %p83
    %p85 = scmp.ne.s32.totalorder %s74, %s75
    %p86 = scmp.eq.s32.totalorder %s13, 0
    %p87 = por %p85, %p86
    %p88 = scmp.ne.s32.totalorder %s74, %s75
    %p89 = scmp.eq.s32.totalorder %s14, 1
    %p90 = por %p88, %p89
    %p92 = scmp.ne.s32.totalorder %s75, %s91
    %p93 = scmp.eq.s32.totalorder %s14, 0
    %p94 = por %p92, %p93
    %s95 = ssub.s32 %s15, %s34
    %s96 = ssub.s32 %s16, %s30
    %s97 = sor.u32 %s95, %s96
    %p98 = scmp.eq.s32.totalorder %s97, 0
    %s100 = sadd.s32 %s99, 1
    %s101 = scalar_select %p98, %s99, %s100
    %p104 = pneg %p98
    %p105 = scmp.eq.s32.totalorder %s8, 1
    %p106 = por %p104, %p105
    %p107 = scmp.ne.s32.totalorder %s99, %s102
    %p108 = scmp.eq.s32.totalorder %s8, 0
    %p109 = por %p107, %p108
    %p110 = scmp.ne.s32.totalorder %s99, %s102
    %p111 = scmp.eq.s32.totalorder %s13, 1
    %p112 = por %p110, %p111
    %p113 = scmp.ne.s32.totalorder %s102, %s103
    %p114 = scmp.eq.s32.totalorder %s13, 0
    %p115 = por %p113, %p114
    %p116 = scmp.ne.s32.totalorder %s102, %s103
    %p117 = scmp.eq.s32.totalorder %s14, 1
    %p118 = por %p116, %p117
    %p120 = scmp.ne.s32.totalorder %s103, %s119
    %p121 = scmp.eq.s32.totalorder %s14, 0
    %p122 = por %p120, %p121
    %p123 = scmp.le.s32.totalorder 1, %s8
    %p124 = scmp.lt.s32.totalorder %s8, 3
    %p125 = pnand %p123, %p124
    %p126 = pneg %p125
    // Predicated region
    $region9: #{joint_loss.1} parent=5 // pred_check
      _
    $region10: #{joint_loss.1} parent=5 // pred_check_branch
      %128 = sbr.rel (%p125) target = $region12
    $region11: #{joint_loss.1} parent=5 // pred_region
      %s129 = ssub.s32 %s8, 1
    $region12: #{joint_loss.1} parent=5 // pred_fallthru
      _
    %p130 = scmp.lt.s32.totalorder %s8, 2
    // Predicated region
    $region13: #{joint_loss.1} parent=5 // pred_check
      %p131 = pneg %p130
    $region14: #{joint_loss.1} parent=5 // pred_check_branch
      %133 = sbr.rel (%p131) target = $region16
    $region15: #{joint_loss.1} parent=5 // pred_region
      // Predicated region
      $region17: #{joint_loss.1} parent=15 // pred_check
        %p134 = pneg %p51
      $region18: #{joint_loss.1} parent=15 // pred_check_branch
        %136 = sbr.rel (%p134) target = $region20
      $region19: #{joint_loss.1} parent=15 // pred_region
        %s137 = sadd.s32 %s16, %s17
        %s138 = smul.u32 2, %s137
        %p139 = scmp.lt.s32.totalorder %s15, 1
        %s140 = scalar_select %p139, %s15, 1
        %p141 = scmp.lt.s32.totalorder %s138, 1
        %s142 = scalar_select %p141, %s138, 1
        %s143 = smul.addr %s140, 2
        %s144 = sadd.s32 %s142, %s143
        %s145 = smul.addr %s144, 4
        %s146 = scalar_lea.vmem %s0, %s145
        %s147 = sadd.s32 %s16, %s17
        %s148 = smul.u32 2, %s147
      $region20: #{joint_loss.1} parent=15 // pred_fallthru
        _
      // Predicated region
      $region21: #{joint_loss.1} parent=15 // pred_check
        %p149 = pneg %p81
      $region22: #{joint_loss.1} parent=15 // pred_check_branch
        %151 = sbr.rel (%p149) target = $region24
      $region23: #{joint_loss.1} parent=15 // pred_region
        %s152 = sadd.s32 %s16, %s17
        %s153 = smul.u32 2, %s152
        %p154 = scmp.lt.s32.totalorder %s15, 1
        %s155 = scalar_select %p154, %s15, 1
        %p156 = scmp.lt.s32.totalorder %s153, 1
        %s157 = scalar_select %p156, %s153, 1
        %s158 = smul.addr %s155, 2
        %s159 = sadd.s32 %s157, %s158
        %s160 = scalar_lea.vmem %s1, %s159
        %s161 = sadd.s32 %s16, %s17
        %s162 = smul.u32 2, %s161
      $region24: #{joint_loss.1} parent=15 // pred_fallthru
        _
    $region16: #{joint_loss.1} parent=5 // pred_fallthru
      _
    %p163 = scmp.le.s32.totalorder 1, %s8
    %p164 = scmp.lt.s32.totalorder %s8, 3
    %p165 = pnand %p163, %p164
    %p166 = pneg %p165
    // Predicated region
    $region25: #{joint_loss.1} parent=5 // pred_check
      _
    $region26: #{joint_loss.1} parent=5 // pred_check_branch
      %168 = sbr.rel (%p165) target = $region28
    $region27: #{joint_loss.1} parent=5 // pred_region
      %s169 = ssub.s32 %s8, 1
      %s170 = sadd.s32 %s19, %s20
      %s171 = smul.u32 2, %s170
      %p172 = scmp.lt.s32.totalorder %s18, 1
      %s173 = scalar_select %p172, %s18, 1
      %p174 = scmp.lt.s32.totalorder %s171, 1
      %s175 = scalar_select %p174, %s171, 1
      %s176 = smul.addr %s173, 2
      %s177 = sadd.s32 %s175, %s176
      %s178 = smul.addr %s177, 4
      %s179 = scalar_lea.vmem %s0, %s178
      %p180 = pneg %p57
      %p181 = pneg %p54
      %s182 = sadd.s32 %s19, %s20
      %s183 = smul.u32 2, %s182
      %p184 = scmp.lt.s32.totalorder %s18, 1
      %s185 = scalar_select %p184, %s18, 1
      %p186 = scmp.lt.s32.totalorder %s183, 1
      %s187 = scalar_select %p186, %s183, 1
      %s188 = smul.addr %s185, 2
      %s189 = sadd.s32 %s187, %s188
      %s190 = scalar_lea.vmem %s1, %s189
      %p191 = pneg %p87
      %p192 = pneg %p84
      %p193 = pneg %p115
      %p194 = pneg %p112
      %p195 = scmp.lt.s32.totalorder %s18, 1
      %s196 = scalar_select %p195, %s18, 1
      %p197 = scmp.lt.s32.totalorder %s19, 0
      %s198 = scalar_select %p197, %s19, 0
      %s199 = sadd.s32 %s198, %s196
      %s200 = smul.addr %s199, 4
      %s201 = scalar_lea.vmem %s2, %s200
      %s202 = sadd.s32 %s19, %s20
      %s203 = smul.u32 2, %s202
      %p204 = scmp.lt.s32.totalorder %s18, 1
      %s205 = scalar_select %p204, %s18, 1
      %p206 = scmp.lt.s32.totalorder %s203, 1
      %s207 = scalar_select %p206, %s203, 1
      %s208 = smul.addr %s205, 2
      %s209 = sadd.s32 %s207, %s208
      %s210 = smul.addr %s209, 4
      %s211 = scalar_lea.vmem %s0, %s210
      %s212 = sadd.s32 %s19, %s20
      %s213 = smul.u32 2, %s212
      %s214 = sadd.s32 %s19, %s20
      %s215 = smul.u32 2, %s214
      %p216 = scmp.lt.s32.totalorder %s18, 1
      %s217 = scalar_select %p216, %s18, 1
      %p218 = scmp.lt.s32.totalorder %s215, 1
      %s219 = scalar_select %p218, %s215, 1
      %s220 = smul.addr %s217, 2
      %s221 = sadd.s32 %s219, %s220
      %s222 = scalar_lea.vmem %s1, %s221
      %s223 = sadd.s32 %s19, %s20
      %s224 = smul.u32 2, %s223
      %p225 = scmp.lt.s32.totalorder %s18, 1
      %s226 = scalar_select %p225, %s18, 1
      %p227 = scmp.lt.s32.totalorder %s19, 0
      %s228 = scalar_select %p227, %s19, 0
      %s229 = sadd.s32 %s228, %s226
      %s230 = smul.addr %s229, 4
      %s231 = scalar_lea.vmem %s2, %s230
      %p232 = scmp.eq.s32.totalorder %s20, 0
      // Predicated region
      $region29: #{joint_loss.1} parent=27 // pred_check
        %p233 = pneg %p232
      $region30: #{joint_loss.1} parent=27 // pred_check_branch
        %235 = sbr.rel (%p233) target = $region32
      $region31: #{joint_loss.1} parent=27 // pred_region
        %vm236 = vcmask 3072
        %237 = vst.msk [vmem:[#allocation2] sm:$0xf] %vm236, 0.0
        %238 = vst.msk [vmem:[#allocation3] sm:$0xf] %vm236, 0.0
        %239 = vst.msk [vmem:[#allocation4] sm:$0xf] %vm236, 0.0
        %vm240 = vcmask 0
        %241 = vst.msk [vmem:[#allocation5] sm:$0x1] %vm240, 0.0
      $region32: #{joint_loss.1} parent=27 // pred_fallthru
        _
      %v242 = vld [vmem:[%s211] sm:$0xff]
      %v243 = vld [vmem:[%s222] sm:$0x3]
      %vm244 = vcmp.ne.s32.totalorder %v243, 4294967196
      %v245 = vsel %vm244, 1, 0
      %v246 = vcvt.s32.f32 %v245
      %v247 = vlaneseq
      %v248 = vshrl.u32 %v247, 7
      %v249 = vperm.slane %v243, 0
      %v250 = vperm.slane %v243, 1
      %vm251 = vcmp.eq.s32.totalorder %v248, %v249
      %vm252 = vcmp.eq.s32.totalorder %v248, %v250
      %v253 = vperm.slane %v245, 0
      %v254 = vperm.slane %v245, 1
      %vm255 = vcmp.eq.s32.totalorder %v253, 1
      %vm256 = vcmp.eq.s32.totalorder %v254, 1
      %vm257 = vmand %vm251, %vm255
      %vm258 = vmand %vm252, %vm256
      %v259 = vsel %vm257, 1.0, 0.0
      %v260 = vsel %vm258, 1.0, 0.0
      %262 = vst [vmem:[#allocation1] ss:$2 sm:$0xff] %v242
      %v263 = vld.sshfl [vmem:[#allocation1] sm:$0xff pattern:$0x75316420]
      %v264 = vld.sshfl [vmem:[#allocation1 + $0x8] sm:$0xff pattern:$0x75316420]
      %vm267 = vcmask 1043456
      %v268 = vsel %vm267, %v263, -inf
      %v269 = vrot.slane %v268, 4
      %v270 = vmax.f32 %v268, %v269
      %v271 = vrot.slane %v270, 2
      %v272 = vmax.f32 %v270, %v271
      %v273 = vrot.slane %v272, 1
      %v274 = vmax.f32 %v272, %v273
      %v275 = vsel %vm267, %v264, -inf
      %v276 = vrot.slane %v275, 4
      %v277 = vmax.f32 %v275, %v276
      %v278 = vrot.slane %v277, 2
      %v279 = vmax.f32 %v277, %v278
      %v280 = vrot.slane %v279, 1
      %v281 = vmax.f32 %v279, %v280
      %v284 = vrot.slane %v281, 4
      %v285 = vsel %vm267, %v274, %v284
      %v287 = vsub.f32 %v242, %v285
      %v288 = vmul.f32 %v287, 1.442695
      %v289 = vpow.pop %v288
      %291 = vst [vmem:[#allocation1] ss:$2 sm:$0xff] %v289
      %v292 = vld.sshfl [vmem:[#allocation1] sm:$0xff pattern:$0x75316420]
      %v293 = vld.sshfl [vmem:[#allocation1 + $0x8] sm:$0xff pattern:$0x75316420]
      %v296 = vsel %vm267, %v292, 0.0
      %v297 = vrot.slane %v296, 4
      %v298 = vadd.f32 %v296, %v297
      %v299 = vrot.slane %v298, 2
      %v300 = vadd.f32 %v298, %v299
      %v301 = vrot.slane %v300, 1
      %v302 = vadd.f32 %v300, %v301
      %v303 = vsel %vm267, %v293, 0.0
      %v304 = vrot.slane %v303, 4
      %v305 = vadd.f32 %v303, %v304
      %v306 = vrot.slane %v305, 2
      %v307 = vadd.f32 %v305, %v306
      %v308 = vrot.slane %v307, 1
      %v309 = vadd.f32 %v307, %v308
      %v310 = vrcp.pop %v302
      %v311 = vrcp.pop %v309
      %v313 = vperm.slane %v246, 0
      %v314 = vperm.slane %v246, 1
      %v317 = vmul.f32 %v310, %v313
      %v318 = vmul.f32 %v311, %v314
      %v319 = vperm.slane %v317, 0
      %v320 = vperm.slane %v318, 0
      %v323 = vrot.slane %v320, 4
      %v324 = vsel %vm267, %v319, %v323
      %v326 = vmul.f32 %v289, %v324
      %v327 = vlog2.pop %v302
      %v328 = vmul.f32 %v327, 0.6931472
      %v329 = vlog2.pop %v309
      %v330 = vmul.f32 %v329, 0.6931472
      %332 = vst [vmem:[#allocation1] ss:$2 sm:$0xff] %v287
      %v333 = vld.sshfl [vmem:[#allocation1] sm:$0xff pattern:$0x75316420]
      %v334 = vld.sshfl [vmem:[#allocation1 + $0x8] sm:$0xff pattern:$0x75316420]
      %v337 = vmul.f32 %v259, %v333
      %v338 = vmul.f32 %v260, %v334
      %v339 = vsel %vm267, %v337, 0.0
      %v340 = vrot.slane %v339, 4
      %v341 = vadd.f32 %v339, %v340
      %v342 = vrot.slane %v341, 2
      %v343 = vadd.f32 %v341, %v342
      %v344 = vrot.slane %v343, 1
      %v345 = vadd.f32 %v343, %v344
      %v346 = vsel %vm267, %v338, 0.0
      %v347 = vrot.slane %v346, 4
      %v348 = vadd.f32 %v346, %v347
      %v349 = vrot.slane %v348, 2
      %v350 = vadd.f32 %v348, %v349
      %v351 = vrot.slane %v350, 1
      %v352 = vadd.f32 %v350, %v351
      %v353 = vsub.f32 %v328, %v345
      %v354 = vsub.f32 %v330, %v352
      %v355 = vmul.f32 %v353, %v313
      %v356 = vmul.f32 %v354, %v314
      %v357 = vld [vmem:[#allocation2] sm:$0xf]
      %v360 = vrot.slane %v260, 4
      %v361 = vsel %vm267, %v259, %v360
      %v363 = vmul.f32 %v326, %v361
      %365 = vst [vmem:[#allocation1] ss:$2 sm:$0xff] %v363
      %v366 = vld.sshfl [vmem:[#allocation1] sm:$0xff pattern:$0x75316420]
      %v367 = vld.sshfl [vmem:[#allocation1 + $0x8] sm:$0xff pattern:$0x75316420]
      %v370 = vsel %vm267, %v366, 0.0
      %v371 = vsel %vm267, %v367, 0.0
      %v372 = vadd.f32 %v370, %v371
      %373 = vadd.xlane.f32.xlu0 %v372
      %v374 = vpop.xlane.xlu0 %373
      %v375 = vadd.f32 %v357, %v374
      %vm376 = vcmask 3072
      %377 = vst.msk [vmem:[#allocation2] sm:$0xf] %vm376, %v375
      %v378 = vld [vmem:[#allocation3] sm:$0xf]
      %380 = vst [vmem:[#allocation1] ss:$2 sm:$0xff] %v326
      %v381 = vld.sshfl [vmem:[#allocation1] sm:$0xff pattern:$0x75316420]
      %v382 = vld.sshfl [vmem:[#allocation1 + $0x8] sm:$0xff pattern:$0x75316420]
      %v385 = vsel %vm267, %v381, 0.0
      %v386 = vsel %vm267, %v382, 0.0
      %v387 = vadd.f32 %v385, %v386
      %388 = vadd.xlane.f32.xlu0 %v387
      %v389 = vpop.xlane.xlu0 %388
      %v390 = vadd.f32 %v378, %v389
      %391 = vst.msk [vmem:[#allocation3] sm:$0xf] %vm376, %v390
      %v392 = vld [vmem:[#allocation4] sm:$0xf]
      %v393 = vsel %vm267, %v259, 0.0
      %v394 = vsel %vm267, %v260, 0.0
      %v395 = vadd.f32 %v393, %v394
      %396 = vadd.xlane.f32.xlu0 %v395
      %v397 = vpop.xlane.xlu0 %396
      %v398 = vadd.f32 %v392, %v397
      %399 = vst.msk [vmem:[#allocation4] sm:$0xf] %vm376, %v398
      %v400 = vld [vmem:[#allocation5] sm:$0x1]
      %vm401 = vcmask 1040384
      %v402 = vsel %vm401, %v355, 0.0
      %v403 = vsel %vm401, %v356, 0.0
      %v404 = vadd.f32 %v402, %v403
      %405 = vadd.xlane.f32.xlu0 %v404
      %v406 = vpop.xlane.xlu0 %405
      %v407 = vadd.f32 %v400, %v406
      %vm408 = vcmask 0
      %409 = vst.msk [vmem:[#allocation5] sm:$0x1] %vm408, %v407
      // Predicated region
      $region33: #{joint_loss.1} parent=27 // pred_check
        %p410 = pneg %p232
      $region34: #{joint_loss.1} parent=27 // pred_check_branch
        %412 = sbr.rel (%p410) target = $region36
      $region35: #{joint_loss.1} parent=27 // pred_region
        %v413 = vld [vmem:[#allocation5] sm:$0x1]
        %v415 = vperm.slane %v413, 0
        %v416 = vld [vmem:[#allocation2] sm:$0xf]
        %v417 = vld [vmem:[#allocation3] sm:$0xf]
        %v418 = vld [vmem:[#allocation4] sm:$0xf]
        %420 = vrot.lane.b32.xlu0 %v417, 1
        %v421 = vpop.permute.xlu0 %420
        %424 = vrot.lane.b32.xlu0 %v418, 2
        %v425 = vpop.permute.xlu0 %424
        %427 = vrot.lane.b32.xlu0 %v415, 3
        %v428 = vpop.permute.xlu0 %427
        %vm430 = vcmask 7168
        %v431 = vsel %vm430, %v416, %v421
        %vm432 = vcmask 15360
        %v433 = vsel %vm432, %v431, %v425
        %vm434 = vcmask 23552
        %v435 = vsel %vm434, %v433, %v428
        %vm436 = vcmask 27648
        %437 = vst.msk [vmem:[%s231] sm:$0xf] %vm436, %v435
      $region36: #{joint_loss.1} parent=27 // pred_fallthru
        _
      %p438 = scmp.lt.s32.totalorder %s18, 1
      %s439 = scalar_select %p438, %s18, 1
      %p440 = scmp.lt.s32.totalorder %s19, 0
      %s441 = scalar_select %p440, %s19, 0
      %s442 = sadd.s32 %s441, %s439
      %s443 = smul.addr %s442, 4
      %s444 = scalar_lea.vmem %s2, %s443
      // Predicated region
      $region37: #{joint_loss.1} parent=27 // pred_check
        %p445 = pneg %p112
      $region38: #{joint_loss.1} parent=27 // pred_check_branch
        %447 = sbr.rel (%p445) target = $region40
      $region39: #{joint_loss.1} parent=27 // pred_region
        _
      $region40: #{joint_loss.1} parent=27 // pred_fallthru
        _
    $region28: #{joint_loss.1} parent=5 // pred_fallthru
      _
    %p448 = scmp.le.s32.totalorder 2, %s8
    // Predicated region
    $region41: #{joint_loss.1} parent=5 // pred_check
      %p449 = pneg %p448
    $region42: #{joint_loss.1} parent=5 // pred_check_branch
      %451 = sbr.rel (%p449) target = $region44
    $region43: #{joint_loss.1} parent=5 // pred_region
      %s452 = ssub.s32 %s8, 2
      // Predicated region
      $region45: #{joint_loss.1} parent=43 // pred_check
        %p453 = pneg %p118
      $region46: #{joint_loss.1} parent=43 // pred_check_branch
        %455 = sbr.rel (%p453) target = $region48
      $region47: #{joint_loss.1} parent=43 // pred_region
        %p456 = scmp.lt.s32.totalorder %s21, 1
        %s457 = scalar_select %p456, %s21, 1
        %p458 = scmp.lt.s32.totalorder %s22, 0
        %s459 = scalar_select %p458, %s22, 0
        %s460 = sadd.s32 %s459, %s457
        %s461 = smul.addr %s460, 4
        %s462 = scalar_lea.vmem %s2, %s461
      $region48: #{joint_loss.1} parent=43 // pred_fallthru
        _
    $region44: #{joint_loss.1} parent=5 // pred_fallthru
      _
  $region6: #{joint_loss.1} parent=0 // loop_footer
    %s12 = sadd.s32 1, %s8
  $region7: #{joint_loss.1} parent=0 // loop_footer_branch
    %7 = sbr.rel target = $region3
  $region8: #{joint_loss.1} parent=0 // loop_exit
    _

</llo_original>
